<compile_context>
chip_gen: v7x
topology: tpu7x:2x2x1
jax: 0.10.0
libtpu: 0.0.40
codegen_flags: <defaults>
</compile_context>

<pallas_src>
import jax
import jax.numpy as jnp
from jax import lax
from jax.experimental import pallas as pl
from jax.experimental.pallas import tpu as pltpu


def _round_up(x, m):
    return ((x + m - 1) // m) * m


def encoder_gru_kernel(tok_ref,   # VMEM (T, 1)   int32 token ids
                       emb_ref,   # VMEM (Vp, Hp) embedding table (padded)
                       h0_ref,    # VMEM (1, Hp)  initial hidden (padded, f32)
                       wih_ref,   # VMEM (Hp, 3Hp) fused input weights  [r|z|n], lane-aligned
                       whh_ref,   # VMEM (Hp, 3Hp) fused hidden weights [r|z|n], lane-aligned
                       bi_ref,    # VMEM (1, 3Hp) b_ih with b_hh folded in for r,z (f32)
                       bhn_ref,   # VMEM (1, Hp)  b_hh for the n gate (f32)
                       out_ref):  # VMEM (T, Hp)  per-step hidden states (f32)
    T, Hp = out_ref.shape
    Vp = emb_ref.shape[0]

    # ---- Stage 1: embedding gather as a one-hot matmul (no per-row DMA) ----
    tok = tok_ref[...]                                            # (T, 1) int32
    onehot = (tok == lax.broadcasted_iota(jnp.int32, (T, Vp), 1)
              ).astype(emb_ref.dtype)                             # (T, Vp)
    x_all = jnp.dot(onehot, emb_ref[...],
                    preferred_element_type=jnp.float32)           # (T, Hp) f32

    # ---- Stage 2: input projection for ALL timesteps in one matmul ----
    gi_all = jnp.dot(x_all.astype(wih_ref.dtype), wih_ref[...],
                     preferred_element_type=jnp.float32) + bi_ref[...]  # (T, 3Hp)

    # ---- Stage 3: sequential GRU recurrence (only the hidden matmul per step) ----
    whh = whh_ref[...]
    bhn = bhn_ref[...]
    h = h0_ref[...]                                               # (1, Hp) f32
    for t in range(T):                                            # static unroll
        gi = gi_all[t:t + 1, :]                                   # (1, 3Hp)
        # no-op cast when weights are f32; single VPU cast per step when bf16
        gh = jnp.dot(h.astype(whh.dtype), whh,
                     preferred_element_type=jnp.float32)          # (1, 3Hp)
        r = jax.nn.sigmoid(gi[:, 0:Hp] + gh[:, 0:Hp])
        z = jax.nn.sigmoid(gi[:, Hp:2 * Hp] + gh[:, Hp:2 * Hp])
        n = jnp.tanh(gi[:, 2 * Hp:] + r * (gh[:, 2 * Hp:] + bhn))
        h = (1.0 - z) * n + z * h                                 # torch.nn.GRU rule
        out_ref[pl.ds(t, 1), :] = h


def prepare_params(raw_params, param_dtype=jnp.float32):
    """One-time parameter prep: fuse/transpose/pad weights, fold biases.

    param_dtype=jnp.bfloat16 halves weight DMA/VMEM (recommended on v6e/v7x);
    gate math stays float32 inside the kernel regardless.
    """
    emb, w_ih, w_hh, b_ih, b_hh = raw_params
    V, H = emb.shape
    Hp = max(128, _round_up(H, 128))     # lane-aligned gate width
    Vp = _round_up(V, 8)                 # sublane-aligned vocab

    emb_p = jnp.zeros((Vp, Hp), param_dtype).at[:V, :H].set(emb.astype(param_dtype))

    def fuse(w):  # torch layout (3H, H), gate order [r; z; n] -> (Hp, 3Hp), [r|z|n]
        wt = jnp.zeros((Hp, 3 * Hp), param_dtype)
        for g in range(3):
            wt = wt.at[:H, g * Hp:g * Hp + H].set(
                jnp.transpose(w[g * H:(g + 1) * H, :]).astype(param_dtype))
        return wt

    wih_p = fuse(w_ih)
    whh_p = fuse(w_hh)

    b_ih = b_ih.astype(jnp.float32)
    b_hh = b_hh.astype(jnp.float32)
    bi_p = jnp.zeros((1, 3 * Hp), jnp.float32)
    bi_p = bi_p.at[0, 0:H].set(b_ih[0:H] + b_hh[0:H])                   # r
    bi_p = bi_p.at[0, Hp:Hp + H].set(b_ih[H:2 * H] + b_hh[H:2 * H])     # z
    bi_p = bi_p.at[0, 2 * Hp:2 * Hp + H].set(b_ih[2 * H:3 * H])         # n (input part)
    bhn_p = jnp.zeros((1, Hp), jnp.float32).at[0, :H].set(b_hh[2 * H:3 * H])

    return dict(emb=emb_p, wih=wih_p, whh=whh_p, bi=bi_p, bhn=bhn_p,
                H=H, Hp=Hp, V=V, Vp=Vp)


def encoder_forward(tokens, hidden, prep):
    """tokens: int32 scalar or (T,) ids; hidden: (1, 1, H) f32.

    Returns (output, hidden): output is (T, 1, H) (== (1,1,H) for one token,
    matching the PyTorch module), hidden is the final (1, 1, H) state.
    """
    emb_p, wih_p, whh_p = prep["emb"], prep["wih"], prep["whh"]
    bi_p, bhn_p = prep["bi"], prep["bhn"]
    H, Hp, V = prep["H"], prep["Hp"], prep["V"]

    tokens = jnp.asarray(tokens, jnp.int32).reshape(-1)
    # NOTE: out-of-range ids are clipped to valid rows (conscious deviation
    # from PyTorch, which would error).
    tokens = jnp.clip(tokens, 0, V - 1)
    T = int(tokens.shape[0])
    tok2d = tokens.reshape(T, 1)

    h0_p = jnp.zeros((1, Hp), jnp.float32).at[:, :H].set(
        hidden.reshape(1, H).astype(jnp.float32))

    # Explicit VMEM budget: everything is resident once (no pipeline buffers).
    param_bytes = sum(int(a.size) * a.dtype.itemsize
                      for a in (emb_p, wih_p, whh_p, bi_p, bhn_p))
    act_bytes = (T * 1 + T * Hp + T * 3 * Hp + T * Hp + Hp) * 4
    vmem_limit = min(max(2 * (param_bytes + act_bytes) + (2 << 20), 4 << 20),
                     32 << 20)  # fits the scoped default on v5e/v6e/v7x

    out_pad = pl.pallas_call(
        encoder_gru_kernel,
        out_shape=jax.ShapeDtypeStruct((T, Hp), jnp.float32),
        in_specs=[pl.BlockSpec(memory_space=pltpu.MemorySpace.VMEM)] * 7,
        out_specs=pl.BlockSpec(memory_space=pltpu.MemorySpace.VMEM),
        compiler_params=pltpu.CompilerParams(vmem_limit_bytes=vmem_limit),
    )(tok2d, emb_p, h0_p, wih_p, whh_p, bi_p, bhn_p)

    output = out_pad[:, :H].reshape(T, 1, H)        # lane-dense slab -> module layout
    h_final = output[T - 1:T].reshape(1, 1, H)
    return output, h_final


def encoder_forward_ref(token, hidden, raw_params):
    """Pure-JAX reference replicating torch.nn.GRU semantics for validation."""
    emb, w_ih, w_hh, b_ih, b_hh = raw_params
    H = hidden.shape[-1]
    x = emb[token].reshape(1, H)
    h = hidden.reshape(1, H)
    gi = x @ w_ih.T + b_ih
    gh = h @ w_hh.T + b_hh
    i_r, i_z, i_n = gi[:, :H], gi[:, H:2 * H], gi[:, 2 * H:]
    h_r, h_z, h_n = gh[:, :H], gh[:, H:2 * H], gh[:, 2 * H:]
    r = jax.nn.sigmoid(i_r + h_r)
    z = jax.nn.sigmoid(i_z + h_z)
    n = jnp.tanh(i_n + r * h_n)
    h_new = (1.0 - z) * n + z * h
    return h_new.reshape(1, 1, H), h_new.reshape(1, 1, H)


def init_params(key, input_size, hidden_size):
    k0, k1, k2, k3, k4 = jax.random.split(key, 5)
    scale = 1.0 / jnp.sqrt(hidden_size)
    emb = jax.random.normal(k0, (input_size, hidden_size), jnp.float32)
    w_ih = jax.random.uniform(k1, (3 * hidden_size, hidden_size), jnp.float32,
                              -scale, scale)
    w_hh = jax.random.uniform(k2, (3 * hidden_size, hidden_size), jnp.float32,
                              -scale, scale)
    b_ih = jax.random.uniform(k3, (3 * hidden_size,), jnp.float32, -scale, scale)
    b_hh = jax.random.uniform(k4, (3 * hidden_size,), jnp.float32, -scale, scale)
    return emb, w_ih, w_hh, b_ih, b_hh


if __name__ == "__main__":
    input_size = 16    # vocab size
    hidden_size = 32

    key = jax.random.PRNGKey(0)
    raw = init_params(key, input_size, hidden_size)
    prep = prepare_params(raw)   # one-time: fused/padded weights, folded biases

    # --- single token: exact analogue of Encoder.forward(input, hidden) ---
    token = jnp.int32(5)
    hidden0 = jnp.zeros((1, 1, hidden_size), jnp.float32)   # initHidden()

    out, hid = encoder_forward(token, hidden0, prep)
    jax.block_until_ready((out, hid))

    out_ref, hid_ref = encoder_forward_ref(token, hidden0, raw)
    assert out.shape == (1, 1, hidden_size) and hid.shape == (1, 1, hidden_size)
    assert jnp.allclose(out, out_ref, atol=1e-3, rtol=1e-3)
    assert jnp.allclose(hid, hid_ref, atol=1e-3, rtol=1e-3)

    # --- multi-token sequence: single kernel invocation, in-kernel recurrence ---
    tokens = jnp.array([3, 1, 5, 7, 0, 9, 2, 11], jnp.int32)   # seq_len = 8
    outs, hid_seq = encoder_forward(tokens, hidden0, prep)
    jax.block_until_ready((outs, hid_seq))

    h = hidden0
    outs_ref = []
    for t in tokens:
        o, h = encoder_forward_ref(t, h, raw)
        outs_ref.append(o)
    outs_ref = jnp.concatenate(outs_ref, axis=0)               # (8, 1, H)
    assert outs.shape == (tokens.shape[0], 1, hidden_size)
    assert jnp.allclose(outs, outs_ref, atol=1e-3, rtol=1e-3)
    assert jnp.allclose(hid_seq, outs_ref[-1:], atol=1e-3, rtol=1e-3)

    print("KERNEL_OK")
</pallas_src>

<mosaic_0001>
module attributes {stable_mosaic.version = 11 : i64} {
  func.func @encoder_gru_kernel(%arg0: memref<1x1xi32, #tpu.memory_space<vmem>>, %arg1: memref<16x128xf32, #tpu.memory_space<vmem>>, %arg2: memref<1x128xf32, #tpu.memory_space<vmem>>, %arg3: memref<128x384xf32, #tpu.memory_space<vmem>>, %arg4: memref<128x384xf32, #tpu.memory_space<vmem>>, %arg5: memref<1x384xf32, #tpu.memory_space<vmem>>, %arg6: memref<1x128xf32, #tpu.memory_space<vmem>>, %arg7: memref<1x128xf32, #tpu.memory_space<vmem>>) attributes {dimension_semantics = [], scalar_prefetch = 0 : i64, scratch_operands = 0 : i64, tpu.core_type = #tpu.core_type<tc>} {
    %c0 = arith.constant 0 : index
    %c0_0 = arith.constant 0 : index
    %0 = vector.load %arg0[%c0, %c0_0] : memref<1x1xi32, #tpu.memory_space<vmem>>, vector<1x1xi32>
    %1 = tpu.iota {dimensions = array<i32: 1>} : vector<1x16xi32>
    %2 = vector.broadcast %0 : vector<1x1xi32> to vector<1x16xi32>
    %3 = arith.cmpi eq, %2, %1 : vector<1x16xi32>
    %4 = arith.extui %3 : vector<1x16xi1> to vector<1x16xi32>
    %5 = arith.sitofp %4 : vector<1x16xi32> to vector<1x16xf32>
    %c0_1 = arith.constant 0 : index
    %c0_2 = arith.constant 0 : index
    %6 = vector.load %arg1[%c0_1, %c0_2] : memref<16x128xf32, #tpu.memory_space<vmem>>, vector<16x128xf32>
    %cst = arith.constant dense<0.000000e+00> : vector<1x128xf32>
    %7 = tpu.matmul %5, %6, %cst {dimension_numbers = #tpu.dot_dimension_numbers<[1], [0], [0], [1], [0, 0, 1, 1], [], []>} : vector<1x16xf32>, vector<16x128xf32>, vector<1x128xf32> -> vector<1x128xf32>
    %c0_3 = arith.constant 0 : index
    %c0_4 = arith.constant 0 : index
    %8 = vector.load %arg3[%c0_3, %c0_4] : memref<128x384xf32, #tpu.memory_space<vmem>>, vector<128x384xf32>
    %cst_5 = arith.constant dense<0.000000e+00> : vector<1x384xf32>
    %9 = tpu.matmul %7, %8, %cst_5 {dimension_numbers = #tpu.dot_dimension_numbers<[1], [0], [0], [1], [0, 0, 1, 1], [], []>} : vector<1x128xf32>, vector<128x384xf32>, vector<1x384xf32> -> vector<1x384xf32>
    %c0_6 = arith.constant 0 : index
    %c0_7 = arith.constant 0 : index
    %10 = vector.load %arg5[%c0_6, %c0_7] : memref<1x384xf32, #tpu.memory_space<vmem>>, vector<1x384xf32>
    %11 = arith.addf %9, %10 : vector<1x384xf32>
    %c0_8 = arith.constant 0 : index
    %c0_9 = arith.constant 0 : index
    %12 = vector.load %arg4[%c0_8, %c0_9] : memref<128x384xf32, #tpu.memory_space<vmem>>, vector<128x384xf32>
    %c0_10 = arith.constant 0 : index
    %c0_11 = arith.constant 0 : index
    %13 = vector.load %arg6[%c0_10, %c0_11] : memref<1x128xf32, #tpu.memory_space<vmem>>, vector<1x128xf32>
    %c0_12 = arith.constant 0 : index
    %c0_13 = arith.constant 0 : index
    %14 = vector.load %arg2[%c0_12, %c0_13] : memref<1x128xf32, #tpu.memory_space<vmem>>, vector<1x128xf32>
    %cst_14 = arith.constant dense<0.000000e+00> : vector<1x384xf32>
    %15 = tpu.matmul %14, %12, %cst_14 {dimension_numbers = #tpu.dot_dimension_numbers<[1], [0], [0], [1], [0, 0, 1, 1], [], []>} : vector<1x128xf32>, vector<128x384xf32>, vector<1x384xf32> -> vector<1x384xf32>
    %16 = vector.extract_strided_slice %11 {offsets = [0, 0], sizes = [1, 128], strides = [1, 1]} : vector<1x384xf32> to vector<1x128xf32>
    %17 = vector.extract_strided_slice %15 {offsets = [0, 0], sizes = [1, 128], strides = [1, 1]} : vector<1x384xf32> to vector<1x128xf32>
    %18 = arith.addf %16, %17 : vector<1x128xf32>
    %19 = arith.negf %18 : vector<1x128xf32>
    %20 = math.exp %19 : vector<1x128xf32>
    %cst_15 = arith.constant 1.000000e+00 : f32
    %21 = vector.broadcast %cst_15 : f32 to vector<1x128xf32>
    %22 = arith.addf %21, %20 : vector<1x128xf32>
    %23 = arith.divf %21, %22 : vector<1x128xf32>
    %24 = vector.extract_strided_slice %11 {offsets = [0, 128], sizes = [1, 128], strides = [1, 1]} : vector<1x384xf32> to vector<1x128xf32>
    %25 = vector.extract_strided_slice %15 {offsets = [0, 128], sizes = [1, 128], strides = [1, 1]} : vector<1x384xf32> to vector<1x128xf32>
    %26 = arith.addf %24, %25 : vector<1x128xf32>
    %27 = arith.negf %26 : vector<1x128xf32>
    %28 = math.exp %27 : vector<1x128xf32>
    %cst_16 = arith.constant 1.000000e+00 : f32
    %29 = vector.broadcast %cst_16 : f32 to vector<1x128xf32>
    %30 = arith.addf %29, %28 : vector<1x128xf32>
    %31 = arith.divf %29, %30 : vector<1x128xf32>
    %32 = vector.extract_strided_slice %11 {offsets = [0, 256], sizes = [1, 128], strides = [1, 1]} : vector<1x384xf32> to vector<1x128xf32>
    %33 = vector.extract_strided_slice %15 {offsets = [0, 256], sizes = [1, 128], strides = [1, 1]} : vector<1x384xf32> to vector<1x128xf32>
    %34 = arith.addf %33, %13 : vector<1x128xf32>
    %35 = arith.mulf %23, %34 : vector<1x128xf32>
    %36 = arith.addf %32, %35 : vector<1x128xf32>
    %37 = math.tanh %36 : vector<1x128xf32>
    %cst_17 = arith.constant 1.000000e+00 : f32
    %38 = vector.broadcast %cst_17 : f32 to vector<1x128xf32>
    %39 = arith.subf %38, %31 : vector<1x128xf32>
    %40 = arith.mulf %39, %37 : vector<1x128xf32>
    %41 = arith.mulf %31, %14 : vector<1x128xf32>
    %42 = arith.addf %40, %41 : vector<1x128xf32>
    %c0_18 = arith.constant 0 : index
    %c0_19 = arith.constant 0 : index
    %43 = vector.load %arg7[%c0_18, %c0_19] : memref<1x128xf32, #tpu.memory_space<vmem>>, vector<1x128xf32>
    tpu.vector_store %arg7[%c0_18, %c0_19], %42 {strides = array<i32>} : memref<1x128xf32, #tpu.memory_space<vmem>>, vector<1x128xf32>,
    return
  }
}

</mosaic_0001>

<llo_original>
// kernel: tpu_custom_call.1
$region0: #{tpu_custom_call.1}
  #allocation0 [shape = 'u32[]', space=smem, size = 0x4, offset = 0x4, fixed_abs, tag = 'smem constant byte address 0x4 - core index']
  #allocation1 [shape = 'u32[144,128]{1,0:T(1,128)}', space=vmem, size = 0x12000, scoped, tag = 'internal scratch']
  #allocation2 [shape = 's32[1,1]{1,0:T(1,128)S(1)}', space=vmem, size = 0x200, scoped, tag = 'scoped memory for tpu_custom_call.1']
  %s0 = inlined_call_operand.<no memory space> [shape: s32[1,1], index: 0, kind: input, shape index: {}]
  %s1 = inlined_call_operand.hbm [shape: f32[16,128], index: 1, kind: input, shape index: {}]
  %s2 = inlined_call_operand.vmem [shape: f32[1,128], index: 2, kind: input, shape index: {}]
  %s3 = inlined_call_operand.hbm [shape: f32[128,384], index: 3, kind: input, shape index: {}]
  %s4 = inlined_call_operand.hbm [shape: f32[128,384], index: 4, kind: input, shape index: {}]
  %s5 = inlined_call_operand.vmem [shape: f32[1,384], index: 5, kind: input, shape index: {}]
  %s6 = inlined_call_operand.vmem [shape: f32[1,128], index: 6, kind: input, shape index: {}]
  %s7 = inlined_call_operand.hbm [shape: f32[1,128], index: 7, kind: output, shape index: {}]
  %s8 = sld [smem:[#allocation0]]
  $region50: #{tpu_custom_call.1} parent=0
    _
  %s10 = ssub.s32 1, %s8
  %s11 = scalar_select 0, %s10, %s8
  %v12 = vstv %s0
  %13 = vst [vmem:[#allocation2] sm:$0x1] %v12
  $region1: #{tpu_custom_call.1} parent=0
    #allocation3 [shape = 'u8[8192]{0}', space=vmem, size = 0x2000, scoped, tag = 'input window, operand 1, single buffered']
    #allocation4 [shape = 's32[1]{0}', space=sflag, size = 0x4, scoped, tag = 'scoped memory for tpu_custom_call.1']
    #allocation5 [shape = 's32[1]{0}', space=sflag, size = 0x4, scoped, tag = 'scoped memory for tpu_custom_call.1']
    #allocation6 [shape = 'u8[196608]{0}', space=vmem, size = 0x30000, scoped, tag = 'input window, operand 3, single buffered']
    #allocation7 [shape = 's32[1]{0}', space=sflag, size = 0x4, scoped, tag = 'scoped memory for tpu_custom_call.1']
    #allocation8 [shape = 'u8[196608]{0}', space=vmem, size = 0x30000, scoped, tag = 'input window, operand 4, single buffered']
    #allocation9 [shape = 'u8[512]{0}', space=vmem, size = 0x400, scoped, tag = 'output window, operand 0, single buffered']
    %14 = vsyncpa [#allocation4], 0
    %15 = vsyncpa [#allocation7], 0
    %16 = vsyncpa [#allocation5], 0
    // Predicated region
    $region2: #{tpu_custom_call.1} parent=1 // pred_check
      _
    $region3: #{tpu_custom_call.1} parent=1 // pred_check_branch
      %18 = sbr.rel (0) target = $region5
    $region4: #{tpu_custom_call.1} parent=1 // pred_region
      _
    $region5: #{tpu_custom_call.1} parent=1 // pred_fallthru
      _
    // Predicated region
    $region6: #{tpu_custom_call.1} parent=1 // pred_check
      _
    $region7: #{tpu_custom_call.1} parent=1 // pred_check_branch
      %20 = sbr.rel (0) target = $region9
    $region8: #{tpu_custom_call.1} parent=1 // pred_region
      %s22 = ssub.s32 256, 256
      %23 = vsyncadd [#allocation4], %s22
      %s24 = sshll.u32 [#allocation3], 4
      %s25 = int_to_ptr.vmem [resolvable:$true] %s24
      %30 = dma.hbm_to_vmem [thread:$0]  %s1, 256, %s25, [#allocation4], 128, 128, 8
    $region9: #{tpu_custom_call.1} parent=1 // pred_fallthru
      _
    // Predicated region
    $region10: #{tpu_custom_call.1} parent=1 // pred_check
      _
    $region11: #{tpu_custom_call.1} parent=1 // pred_check_branch
      %32 = sbr.rel (0) target = $region13
    $region12: #{tpu_custom_call.1} parent=1 // pred_region
      _
    $region13: #{tpu_custom_call.1} parent=1 // pred_fallthru
      _
    // Predicated region
    $region14: #{tpu_custom_call.1} parent=1 // pred_check
      _
    $region15: #{tpu_custom_call.1} parent=1 // pred_check_branch
      %34 = sbr.rel (0) target = $region17
    $region16: #{tpu_custom_call.1} parent=1 // pred_region
      %s36 = ssub.s32 6144, 6144
      %37 = vsyncadd [#allocation7], %s36
      %s38 = sshll.u32 [#allocation6], 4
      %s39 = int_to_ptr.vmem [resolvable:$true] %s38
      %44 = dma.hbm_to_vmem [thread:$0]  %s3, 6144, %s39, [#allocation7], 384, 384, 24
    $region17: #{tpu_custom_call.1} parent=1 // pred_fallthru
      _
    // Predicated region
    $region18: #{tpu_custom_call.1} parent=1 // pred_check
      _
    $region19: #{tpu_custom_call.1} parent=1 // pred_check_branch
      %46 = sbr.rel (0) target = $region21
    $region20: #{tpu_custom_call.1} parent=1 // pred_region
      %s48 = ssub.s32 6144, 6144
      %49 = vsyncadd [#allocation7], %s48
      %s50 = sshll.u32 [#allocation8], 4
      %s51 = int_to_ptr.vmem [resolvable:$true] %s50
      %56 = dma.hbm_to_vmem [thread:$0]  %s4, 6144, %s51, [#allocation7], 384, 384, 24
    $region21: #{tpu_custom_call.1} parent=1 // pred_fallthru
      _
    // Predicated region
    $region22: #{tpu_custom_call.1} parent=1 // pred_check
      _
    $region23: #{tpu_custom_call.1} parent=1 // pred_check_branch
      %58 = sbr.rel (0) target = $region25
    $region24: #{tpu_custom_call.1} parent=1 // pred_region
      _
    $region25: #{tpu_custom_call.1} parent=1 // pred_fallthru
      _
    // Predicated region
    $region26: #{tpu_custom_call.1} parent=1 // pred_check
      _
    $region27: #{tpu_custom_call.1} parent=1 // pred_check_branch
      %60 = sbr.rel (0) target = $region29
    $region28: #{tpu_custom_call.1} parent=1 // pred_region
      _
    $region29: #{tpu_custom_call.1} parent=1 // pred_fallthru
      _
    // Predicated region
    $region30: #{tpu_custom_call.1} parent=1 // pred_check
      _
    $region31: #{tpu_custom_call.1} parent=1 // pred_check_branch
      %62 = sbr.rel (0) target = $region33
    $region32: #{tpu_custom_call.1} parent=1 // pred_region
      %63 = dma.done [#allocation4], 256
    $region33: #{tpu_custom_call.1} parent=1 // pred_fallthru
      _
    // Predicated region
    $region34: #{tpu_custom_call.1} parent=1 // pred_check
      _
    $region35: #{tpu_custom_call.1} parent=1 // pred_check_branch
      %65 = sbr.rel (0) target = $region37
    $region36: #{tpu_custom_call.1} parent=1 // pred_region
      %66 = dma.done [#allocation7], 6144
    $region37: #{tpu_custom_call.1} parent=1 // pred_fallthru
      _
    // Predicated region
    $region38: #{tpu_custom_call.1} parent=1 // pred_check
      _
    $region39: #{tpu_custom_call.1} parent=1 // pred_check_branch
      %68 = sbr.rel (0) target = $region41
    $region40: #{tpu_custom_call.1} parent=1 // pred_region
      %69 = dma.done [#allocation7], 6144
    $region41: #{tpu_custom_call.1} parent=1 // pred_fallthru
      _
    %v70 = vld [vmem:[#allocation2] sm:$0x1]
    %v71 = vlaneseq
    %v72 = vand.u32 %v71, 127
    %73 = vset.pattern.permute.xlu0 0
    %74 = vperm.xlu0 %73, %v70
    %v75 = vpop.permute.xlu0 %74
    %v76 = vlaneseq
    %v77 = vshrl.u32 %v76, 7
    %v78 = vsub.s32 0, %v77
    %v79 = vrot.slane %v75, %v78
    %vm80 = vcmp.eq.s32.totalorder %v79, %v72
    %v81 = vsel %vm80, 1, 0
    %v82 = vcvt.s32.f32 %v81
    %v83 = vld [vmem:[#allocation3] sm:$0xff]
    %v84 = vld [vmem:[#allocation3 + $0x8] sm:$0xff]
    %vm85 = vcmask 130048
    %v87 = vsel %vm85, %v82, 0
    %89 = vmatprep.subr.mxu0 0.0
    %90 = vmatpush1.msra.mxu0 %v83
    %91 = vmatprep.subr.mxu0 0.0
    %92 = vmatpush1.msra.mxu0 %v84
    %93 = vmatprep.subr.mxu0 0.0
    %94 = vmatpush1.msra.mxu0 0.0
    %95 = vmatprep.subr.mxu0 0.0
    %96 = vmatpush1.msra.mxu0 0.0
    %97 = vmatprep.subr.mxu0 0.0
    %98 = vmatpush1.msra.mxu0 0.0
    %99 = vmatprep.subr.mxu0 0.0
    %100 = vmatpush1.msra.mxu0 0.0
    %101 = vmatprep.subr.mxu0 0.0
    %102 = vmatpush1.msra.mxu0 0.0
    %103 = vmatprep.subr.mxu0 0.0
    %104 = vmatpush1.msra.mxu0 0.0
    %105 = vmatprep.subr.mxu0 0.0
    %106 = vmatpush1.msra.mxu0 0.0
    %107 = vmatprep.subr.mxu0 0.0
    %108 = vmatpush1.msra.mxu0 0.0
    %109 = vmatprep.subr.mxu0 0.0
    %110 = vmatpush1.msra.mxu0 0.0
    %111 = vmatprep.subr.mxu0 0.0
    %112 = vmatpush1.msra.mxu0 0.0
    %113 = vmatprep.subr.mxu0 0.0
    %114 = vmatpush1.msra.mxu0 0.0
    %115 = vmatprep.subr.mxu0 0.0
    %116 = vmatpush1.msra.mxu0 0.0
    %117 = vmatprep.subr.mxu0 0.0
    %118 = vmatpush1.msra.mxu0 0.0
    %119 = vmatprep.subr.mxu0 0.0
    %120 = vmatpush1.msra.mxu0 0.0
    %121 = vmatprep.subr.mxu0 0.0
    %122 = vmatpush1.msra.mxu0 0.0
    %123 = vmatprep.subr.mxu0 0.0
    %124 = vmatpush1.msra.mxu0 0.0
    %125 = vmatprep.subr.mxu0 0.0
    %126 = vmatpush1.msra.mxu0 0.0
    %127 = vmatprep.subr.mxu0 0.0
    %128 = vmatpush1.msra.mxu0 0.0
    %129 = vmatprep.subr.mxu0 0.0
    %130 = vmatpush1.msra.mxu0 0.0
    %131 = vmatprep.subr.mxu0 0.0
    %132 = vmatpush1.msra.mxu0 0.0
    %133 = vmatprep.subr.mxu0 0.0
    %134 = vmatpush1.msra.mxu0 0.0
    %135 = vmatprep.subr.mxu0 0.0
    %136 = vmatpush1.msra.mxu0 0.0
    %137 = vmatprep.subr.mxu0 0.0
    %138 = vmatpush1.msra.mxu0 0.0
    %139 = vmatprep.subr.mxu0 0.0
    %140 = vmatpush1.msra.mxu0 0.0
    %141 = vmatprep.subr.mxu0 0.0
    %142 = vmatpush1.msra.mxu0 0.0
    %143 = vmatprep.subr.mxu0 0.0
    %144 = vmatpush1.msra.mxu0 0.0
    %145 = vmatprep.subr.mxu0 0.0
    %146 = vmatpush1.msra.mxu0 0.0
    %147 = vmatprep.subr.mxu0 0.0
    %148 = vmatpush1.msra.mxu0 0.0
    %149 = vmatprep.subr.mxu0 0.0
    %150 = vmatpush1.msra.mxu0 0.0
    %151 = vmatprep.subr.mxu0 0.0
    %152 = vmatpush1.msra.mxu0 0.0
    %153 = vmatprep.mubr.f32.mxu0 0.0
    %154 = vmatmul.mubr.f32.gmra.mrb[0].mxu0 %v87
    %v155 = vpop.f32.mrb[0].mxu0
    %v156 = vadd.f32 0.0, %v155
    %v157 = vpop.f32.mrb[0].mxu0
    %158 = vdwg.mxu0
    %v159 = vld [vmem:[#allocation6] sm:$0xff]
    %v160 = vld [vmem:[#allocation6 + $0x8] sm:$0xff]
    %v161 = vld [vmem:[#allocation6 + $0x10] sm:$0xff]
    %v162 = vld [vmem:[#allocation6 + $0x18] sm:$0xff]
    %v163 = vld [vmem:[#allocation6 + $0x20] sm:$0xff]
    %v164 = vld [vmem:[#allocation6 + $0x28] sm:$0xff]
    %v165 = vld [vmem:[#allocation6 + $0x30] sm:$0xff]
    %v166 = vld [vmem:[#allocation6 + $0x38] sm:$0xff]
    %v167 = vld [vmem:[#allocation6 + $0x40] sm:$0xff]
    %v168 = vld [vmem:[#allocation6 + $0x48] sm:$0xff]
    %v169 = vld [vmem:[#allocation6 + $0x50] sm:$0xff]
    %v170 = vld [vmem:[#allocation6 + $0x58] sm:$0xff]
    %v171 = vld [vmem:[#allocation6 + $0x60] sm:$0xff]
    %v172 = vld [vmem:[#allocation6 + $0x68] sm:$0xff]
    %v173 = vld [vmem:[#allocation6 + $0x70] sm:$0xff]
    %v174 = vld [vmem:[#allocation6 + $0x78] sm:$0xff]
    %v175 = vld [vmem:[#allocation6 + $0x80] sm:$0xff]
    %v176 = vld [vmem:[#allocation6 + $0x88] sm:$0xff]
    %v177 = vld [vmem:[#allocation6 + $0x90] sm:$0xff]
    %v178 = vld [vmem:[#allocation6 + $0x98] sm:$0xff]
    %v179 = vld [vmem:[#allocation6 + $0xa0] sm:$0xff]
    %v180 = vld [vmem:[#allocation6 + $0xa8] sm:$0xff]
    %v181 = vld [vmem:[#allocation6 + $0xb0] sm:$0xff]
    %v182 = vld [vmem:[#allocation6 + $0xb8] sm:$0xff]
    %v183 = vld [vmem:[#allocation6 + $0xc0] sm:$0xff]
    %v184 = vld [vmem:[#allocation6 + $0xc8] sm:$0xff]
    %v185 = vld [vmem:[#allocation6 + $0xd0] sm:$0xff]
    %v186 = vld [vmem:[#allocation6 + $0xd8] sm:$0xff]
    %v187 = vld [vmem:[#allocation6 + $0xe0] sm:$0xff]
    %v188 = vld [vmem:[#allocation6 + $0xe8] sm:$0xff]
    %v189 = vld [vmem:[#allocation6 + $0xf0] sm:$0xff]
    %v190 = vld [vmem:[#allocation6 + $0xf8] sm:$0xff]
    %v191 = vld [vmem:[#allocation6 + $0x100] sm:$0xff]
    %v192 = vld [vmem:[#allocation6 + $0x108] sm:$0xff]
    %v193 = vld [vmem:[#allocation6 + $0x110] sm:$0xff]
    %v194 = vld [vmem:[#allocation6 + $0x118] sm:$0xff]
    %v195 = vld [vmem:[#allocation6 + $0x120] sm:$0xff]
    %v196 = vld [vmem:[#allocation6 + $0x128] sm:$0xff]
    %v197 = vld [vmem:[#allocation6 + $0x130] sm:$0xff]
    %v198 = vld [vmem:[#allocation6 + $0x138] sm:$0xff]
    %v199 = vld [vmem:[#allocation6 + $0x140] sm:$0xff]
    %v200 = vld [vmem:[#allocation6 + $0x148] sm:$0xff]
    %v201 = vld [vmem:[#allocation6 + $0x150] sm:$0xff]
    %v202 = vld [vmem:[#allocation6 + $0x158] sm:$0xff]
    %v203 = vld [vmem:[#allocation6 + $0x160] sm:$0xff]
    %v204 = vld [vmem:[#allocation6 + $0x168] sm:$0xff]
    %v205 = vld [vmem:[#allocation6 + $0x170] sm:$0xff]
    %v206 = vld [vmem:[#allocation6 + $0x178] sm:$0xff]
    %v207 = vld [vmem:[%s5] sm:$0x7]
    %v209 = vlaneseq
    %v210 = vshrl.u32 %v209, 7
    %v211 = vsub.s32 0, %v210
    %v212 = vrot.slane %v207, %v211
    %v213 = vlaneseq
    %v214 = vshrl.u32 %v213, 7
    %v215 = vsub.s32 1, %v214
    %v216 = vrot.slane %v207, %v215
    %v217 = vlaneseq
    %v218 = vshrl.u32 %v217, 7
    %v219 = vsub.s32 2, %v218
    %v220 = vrot.slane %v207, %v219
    %224 = vmatprep.subr.mxu0 %v160
    %225 = vmatpush1.msra.mxu0 %v159
    %226 = vmatprep.subr.mxu0 %v163
    %227 = vmatpush1.msra.mxu0 %v162
    %228 = vmatprep.subr.mxu0 %v166
    %229 = vmatpush1.msra.mxu0 %v165
    %230 = vmatprep.subr.mxu0 %v169
    %231 = vmatpush1.msra.mxu0 %v168
    %232 = vmatprep.subr.mxu0 %v172
    %233 = vmatpush1.msra.mxu0 %v171
    %234 = vmatprep.subr.mxu0 %v175
    %235 = vmatpush1.msra.mxu0 %v174
    %236 = vmatprep.subr.mxu0 %v178
    %237 = vmatpush1.msra.mxu0 %v177
    %238 = vmatprep.subr.mxu0 %v181
    %239 = vmatpush1.msra.mxu0 %v180
    %240 = vmatprep.subr.mxu0 %v184
    %241 = vmatpush1.msra.mxu0 %v183
    %242 = vmatprep.subr.mxu0 %v187
    %243 = vmatpush1.msra.mxu0 %v186
    %244 = vmatprep.subr.mxu0 %v190
    %245 = vmatpush1.msra.mxu0 %v189
    %246 = vmatprep.subr.mxu0 %v193
    %247 = vmatpush1.msra.mxu0 %v192
    %248 = vmatprep.subr.mxu0 %v196
    %249 = vmatpush1.msra.mxu0 %v195
    %250 = vmatprep.subr.mxu0 %v199
    %251 = vmatpush1.msra.mxu0 %v198
    %252 = vmatprep.subr.mxu0 %v202
    %253 = vmatpush1.msra.mxu0 %v201
    %254 = vmatprep.subr.mxu0 %v205
    %255 = vmatpush1.msra.mxu0 %v204
    %256 = vmatprep.subr.mxu0 0.0
    %257 = vmatpush1.msra.mxu0 0.0
    %258 = vmatprep.subr.mxu0 0.0
    %259 = vmatpush1.msra.mxu0 0.0
    %260 = vmatprep.subr.mxu0 0.0
    %261 = vmatpush1.msra.mxu0 0.0
    %262 = vmatprep.subr.mxu0 0.0
    %263 = vmatpush1.msra.mxu0 0.0
    %264 = vmatprep.subr.mxu0 0.0
    %265 = vmatpush1.msra.mxu0 0.0
    %266 = vmatprep.subr.mxu0 0.0
    %267 = vmatpush1.msra.mxu0 0.0
    %268 = vmatprep.subr.mxu0 0.0
    %269 = vmatpush1.msra.mxu0 0.0
    %270 = vmatprep.subr.mxu0 0.0
    %271 = vmatpush1.msra.mxu0 0.0
    %272 = vmatprep.subr.mxu0 0.0
    %273 = vmatpush1.msra.mxu0 0.0
    %274 = vmatprep.subr.mxu0 0.0
    %275 = vmatpush1.msra.mxu0 0.0
    %276 = vmatprep.subr.mxu0 0.0
    %277 = vmatpush1.msra.mxu0 0.0
    %278 = vmatprep.subr.mxu0 0.0
    %279 = vmatpush1.msra.mxu0 0.0
    %280 = vmatprep.subr.mxu0 0.0
    %281 = vmatpush1.msra.mxu0 0.0
    %282 = vmatprep.subr.mxu0 0.0
    %283 = vmatpush1.msra.mxu0 0.0
    %284 = vmatprep.subr.mxu0 0.0
    %285 = vmatpush1.msra.mxu0 0.0
    %286 = vmatprep.subr.mxu0 0.0
    %287 = vmatpush1.msra.mxu0 0.0
    %288 = vmatprep.mubr.f32.mxu0 0.0
    %289 = vmatmul.mubr.f32.gmra.mrb[0].mxu0 %v156
    %v290 = vpop.f32.mrb[0].mxu0
    %v291 = vadd.f32 %v212, %v290
    %v292 = vpop.f32.mrb[0].mxu0
    %v293 = vadd.f32 %v216, %v292
    %294 = vdwg.mxu0
    %295 = vmatprep.subr.mxu0 0.0
    %296 = vmatpush1.msra.mxu0 %v161
    %297 = vmatprep.subr.mxu0 0.0
    %298 = vmatpush1.msra.mxu0 %v164
    %299 = vmatprep.subr.mxu0 0.0
    %300 = vmatpush1.msra.mxu0 %v167
    %301 = vmatprep.subr.mxu0 0.0
    %302 = vmatpush1.msra.mxu0 %v170
    %303 = vmatprep.subr.mxu0 0.0
    %304 = vmatpush1.msra.mxu0 %v173
    %305 = vmatprep.subr.mxu0 0.0
    %306 = vmatpush1.msra.mxu0 %v176
    %307 = vmatprep.subr.mxu0 0.0
    %308 = vmatpush1.msra.mxu0 %v179
    %309 = vmatprep.subr.mxu0 0.0
    %310 = vmatpush1.msra.mxu0 %v182
    %311 = vmatprep.subr.mxu0 0.0
    %312 = vmatpush1.msra.mxu0 %v185
    %313 = vmatprep.subr.mxu0 0.0
    %314 = vmatpush1.msra.mxu0 %v188
    %315 = vmatprep.subr.mxu0 0.0
    %316 = vmatpush1.msra.mxu0 %v191
    %317 = vmatprep.subr.mxu0 0.0
    %318 = vmatpush1.msra.mxu0 %v194
    %319 = vmatprep.subr.mxu0 0.0
    %320 = vmatpush1.msra.mxu0 %v197
    %321 = vmatprep.subr.mxu0 0.0
    %322 = vmatpush1.msra.mxu0 %v200
    %323 = vmatprep.subr.mxu0 0.0
    %324 = vmatpush1.msra.mxu0 %v203
    %325 = vmatprep.subr.mxu0 0.0
    %326 = vmatpush1.msra.mxu0 %v206
    %327 = vmatprep.subr.mxu0 0.0
    %328 = vmatpush1.msra.mxu0 0.0
    %329 = vmatprep.subr.mxu0 0.0
    %330 = vmatpush1.msra.mxu0 0.0
    %331 = vmatprep.subr.mxu0 0.0
    %332 = vmatpush1.msra.mxu0 0.0
    %333 = vmatprep.subr.mxu0 0.0
    %334 = vmatpush1.msra.mxu0 0.0
    %335 = vmatprep.subr.mxu0 0.0
    %336 = vmatpush1.msra.mxu0 0.0
    %337 = vmatprep.subr.mxu0 0.0
    %338 = vmatpush1.msra.mxu0 0.0
    %339 = vmatprep.subr.mxu0 0.0
    %340 = vmatpush1.msra.mxu0 0.0
    %341 = vmatprep.subr.mxu0 0.0
    %342 = vmatpush1.msra.mxu0 0.0
    %343 = vmatprep.subr.mxu0 0.0
    %344 = vmatpush1.msra.mxu0 0.0
    %345 = vmatprep.subr.mxu0 0.0
    %346 = vmatpush1.msra.mxu0 0.0
    %347 = vmatprep.subr.mxu0 0.0
    %348 = vmatpush1.msra.mxu0 0.0
    %349 = vmatprep.subr.mxu0 0.0
    %350 = vmatpush1.msra.mxu0 0.0
    %351 = vmatprep.subr.mxu0 0.0
    %352 = vmatpush1.msra.mxu0 0.0
    %353 = vmatprep.subr.mxu0 0.0
    %354 = vmatpush1.msra.mxu0 0.0
    %355 = vmatprep.subr.mxu0 0.0
    %356 = vmatpush1.msra.mxu0 0.0
    %357 = vmatprep.subr.mxu0 0.0
    %358 = vmatpush1.msra.mxu0 0.0
    %359 = vmatprep.mubr.f32.mxu0 0.0
    %360 = vmatmul.mubr.f32.gmra.mrb[0].mxu0 %v156
    %v361 = vpop.f32.mrb[0].mxu0
    %v362 = vadd.f32 %v220, %v361
    %v363 = vpop.f32.mrb[0].mxu0
    %364 = vdwg.mxu0
    %v365 = vld [vmem:[#allocation8] sm:$0xff]
    %v366 = vld [vmem:[#allocation8 + $0x8] sm:$0xff]
    %v367 = vld [vmem:[#allocation8 + $0x10] sm:$0xff]
    %v368 = vld [vmem:[#allocation8 + $0x18] sm:$0xff]
    %v369 = vld [vmem:[#allocation8 + $0x20] sm:$0xff]
    %v370 = vld [vmem:[#allocation8 + $0x28] sm:$0xff]
    %v371 = vld [vmem:[#allocation8 + $0x30] sm:$0xff]
    %v372 = vld [vmem:[#allocation8 + $0x38] sm:$0xff]
    %v373 = vld [vmem:[#allocation8 + $0x40] sm:$0xff]
    %v374 = vld [vmem:[#allocation8 + $0x48] sm:$0xff]
    %v375 = vld [vmem:[#allocation8 + $0x50] sm:$0xff]
    %v376 = vld [vmem:[#allocation8 + $0x58] sm:$0xff]
    %v377 = vld [vmem:[#allocation8 + $0x60] sm:$0xff]
    %v378 = vld [vmem:[#allocation8 + $0x68] sm:$0xff]
    %v379 = vld [vmem:[#allocation8 + $0x70] sm:$0xff]
    %v380 = vld [vmem:[#allocation8 + $0x78] sm:$0xff]
    %v381 = vld [vmem:[#allocation8 + $0x80] sm:$0xff]
    %v382 = vld [vmem:[#allocation8 + $0x88] sm:$0xff]
    %v383 = vld [vmem:[#allocation8 + $0x90] sm:$0xff]
    %v384 = vld [vmem:[#allocation8 + $0x98] sm:$0xff]
    %v385 = vld [vmem:[#allocation8 + $0xa0] sm:$0xff]
    %v386 = vld [vmem:[#allocation8 + $0xa8] sm:$0xff]
    %v387 = vld [vmem:[#allocation8 + $0xb0] sm:$0xff]
    %v388 = vld [vmem:[#allocation8 + $0xb8] sm:$0xff]
    %v389 = vld [vmem:[#allocation8 + $0xc0] sm:$0xff]
    %v390 = vld [vmem:[#allocation8 + $0xc8] sm:$0xff]
    %v391 = vld [vmem:[#allocation8 + $0xd0] sm:$0xff]
    %v392 = vld [vmem:[#allocation8 + $0xd8] sm:$0xff]
    %v393 = vld [vmem:[#allocation8 + $0xe0] sm:$0xff]
    %v394 = vld [vmem:[#allocation8 + $0xe8] sm:$0xff]
    %v395 = vld [vmem:[#allocation8 + $0xf0] sm:$0xff]
    %v396 = vld [vmem:[#allocation8 + $0xf8] sm:$0xff]
    %v397 = vld [vmem:[#allocation8 + $0x100] sm:$0xff]
    %v398 = vld [vmem:[#allocation8 + $0x108] sm:$0xff]
    %v399 = vld [vmem:[#allocation8 + $0x110] sm:$0xff]
    %v400 = vld [vmem:[#allocation8 + $0x118] sm:$0xff]
    %v401 = vld [vmem:[#allocation8 + $0x120] sm:$0xff]
    %v402 = vld [vmem:[#allocation8 + $0x128] sm:$0xff]
    %v403 = vld [vmem:[#allocation8 + $0x130] sm:$0xff]
    %v404 = vld [vmem:[#allocation8 + $0x138] sm:$0xff]
    %v405 = vld [vmem:[#allocation8 + $0x140] sm:$0xff]
    %v406 = vld [vmem:[#allocation8 + $0x148] sm:$0xff]
    %v407 = vld [vmem:[#allocation8 + $0x150] sm:$0xff]
    %v408 = vld [vmem:[#allocation8 + $0x158] sm:$0xff]
    %v409 = vld [vmem:[#allocation8 + $0x160] sm:$0xff]
    %v410 = vld [vmem:[#allocation8 + $0x168] sm:$0xff]
    %v411 = vld [vmem:[#allocation8 + $0x170] sm:$0xff]
    %v412 = vld [vmem:[#allocation8 + $0x178] sm:$0xff]
    %v413 = vld [vmem:[%s6] sm:$0x1]
    %v414 = vld [vmem:[%s2] sm:$0x1]
    %415 = vmatprep.subr.mxu0 %v366
    %416 = vmatpush1.msra.mxu0 %v365
    %417 = vmatprep.subr.mxu0 %v369
    %418 = vmatpush1.msra.mxu0 %v368
    %419 = vmatprep.subr.mxu0 %v372
    %420 = vmatpush1.msra.mxu0 %v371
    %421 = vmatprep.subr.mxu0 %v375
    %422 = vmatpush1.msra.mxu0 %v374
    %423 = vmatprep.subr.mxu0 %v378
    %424 = vmatpush1.msra.mxu0 %v377
    %425 = vmatprep.subr.mxu0 %v381
    %426 = vmatpush1.msra.mxu0 %v380
    %427 = vmatprep.subr.mxu0 %v384
    %428 = vmatpush1.msra.mxu0 %v383
    %429 = vmatprep.subr.mxu0 %v387
    %430 = vmatpush1.msra.mxu0 %v386
    %431 = vmatprep.subr.mxu0 %v390
    %432 = vmatpush1.msra.mxu0 %v389
    %433 = vmatprep.subr.mxu0 %v393
    %434 = vmatpush1.msra.mxu0 %v392
    %435 = vmatprep.subr.mxu0 %v396
    %436 = vmatpush1.msra.mxu0 %v395
    %437 = vmatprep.subr.mxu0 %v399
    %438 = vmatpush1.msra.mxu0 %v398
    %439 = vmatprep.subr.mxu0 %v402
    %440 = vmatpush1.msra.mxu0 %v401
    %441 = vmatprep.subr.mxu0 %v405
    %442 = vmatpush1.msra.mxu0 %v404
    %443 = vmatprep.subr.mxu0 %v408
    %444 = vmatpush1.msra.mxu0 %v407
    %445 = vmatprep.subr.mxu0 %v411
    %446 = vmatpush1.msra.mxu0 %v410
    %447 = vmatprep.subr.mxu0 0.0
    %448 = vmatpush1.msra.mxu0 0.0
    %449 = vmatprep.subr.mxu0 0.0
    %450 = vmatpush1.msra.mxu0 0.0
    %451 = vmatprep.subr.mxu0 0.0
    %452 = vmatpush1.msra.mxu0 0.0
    %453 = vmatprep.subr.mxu0 0.0
    %454 = vmatpush1.msra.mxu0 0.0
    %455 = vmatprep.subr.mxu0 0.0
    %456 = vmatpush1.msra.mxu0 0.0
    %457 = vmatprep.subr.mxu0 0.0
    %458 = vmatpush1.msra.mxu0 0.0
    %459 = vmatprep.subr.mxu0 0.0
    %460 = vmatpush1.msra.mxu0 0.0
    %461 = vmatprep.subr.mxu0 0.0
    %462 = vmatpush1.msra.mxu0 0.0
    %463 = vmatprep.subr.mxu0 0.0
    %464 = vmatpush1.msra.mxu0 0.0
    %465 = vmatprep.subr.mxu0 0.0
    %466 = vmatpush1.msra.mxu0 0.0
    %467 = vmatprep.subr.mxu0 0.0
    %468 = vmatpush1.msra.mxu0 0.0
    %469 = vmatprep.subr.mxu0 0.0
    %470 = vmatpush1.msra.mxu0 0.0
    %471 = vmatprep.subr.mxu0 0.0
    %472 = vmatpush1.msra.mxu0 0.0
    %473 = vmatprep.subr.mxu0 0.0
    %474 = vmatpush1.msra.mxu0 0.0
    %475 = vmatprep.subr.mxu0 0.0
    %476 = vmatpush1.msra.mxu0 0.0
    %477 = vmatprep.subr.mxu0 0.0
    %478 = vmatpush1.msra.mxu0 0.0
    %479 = vmatprep.mubr.f32.mxu0 0.0
    %480 = vmatmul.mubr.f32.gmra.mrb[0].mxu0 %v414
    %v481 = vpop.f32.mrb[0].mxu0
    %v482 = vadd.f32 0.0, %v481
    %v483 = vpop.f32.mrb[0].mxu0
    %v484 = vadd.f32 0.0, %v483
    %485 = vdwg.mxu0
    %486 = vmatprep.subr.mxu0 0.0
    %487 = vmatpush1.msra.mxu0 %v367
    %488 = vmatprep.subr.mxu0 0.0
    %489 = vmatpush1.msra.mxu0 %v370
    %490 = vmatprep.subr.mxu0 0.0
    %491 = vmatpush1.msra.mxu0 %v373
    %492 = vmatprep.subr.mxu0 0.0
    %493 = vmatpush1.msra.mxu0 %v376
    %494 = vmatprep.subr.mxu0 0.0
    %495 = vmatpush1.msra.mxu0 %v379
    %496 = vmatprep.subr.mxu0 0.0
    %497 = vmatpush1.msra.mxu0 %v382
    %498 = vmatprep.subr.mxu0 0.0
    %499 = vmatpush1.msra.mxu0 %v385
    %500 = vmatprep.subr.mxu0 0.0
    %501 = vmatpush1.msra.mxu0 %v388
    %502 = vmatprep.subr.mxu0 0.0
    %503 = vmatpush1.msra.mxu0 %v391
    %504 = vmatprep.subr.mxu0 0.0
    %505 = vmatpush1.msra.mxu0 %v394
    %506 = vmatprep.subr.mxu0 0.0
    %507 = vmatpush1.msra.mxu0 %v397
    %508 = vmatprep.subr.mxu0 0.0
    %509 = vmatpush1.msra.mxu0 %v400
    %510 = vmatprep.subr.mxu0 0.0
    %511 = vmatpush1.msra.mxu0 %v403
    %512 = vmatprep.subr.mxu0 0.0
    %513 = vmatpush1.msra.mxu0 %v406
    %514 = vmatprep.subr.mxu0 0.0
    %515 = vmatpush1.msra.mxu0 %v409
    %516 = vmatprep.subr.mxu0 0.0
    %517 = vmatpush1.msra.mxu0 %v412
    %518 = vmatprep.subr.mxu0 0.0
    %519 = vmatpush1.msra.mxu0 0.0
    %520 = vmatprep.subr.mxu0 0.0
    %521 = vmatpush1.msra.mxu0 0.0
    %522 = vmatprep.subr.mxu0 0.0
    %523 = vmatpush1.msra.mxu0 0.0
    %524 = vmatprep.subr.mxu0 0.0
    %525 = vmatpush1.msra.mxu0 0.0
    %526 = vmatprep.subr.mxu0 0.0
    %527 = vmatpush1.msra.mxu0 0.0
    %528 = vmatprep.subr.mxu0 0.0
    %529 = vmatpush1.msra.mxu0 0.0
    %530 = vmatprep.subr.mxu0 0.0
    %531 = vmatpush1.msra.mxu0 0.0
    %532 = vmatprep.subr.mxu0 0.0
    %533 = vmatpush1.msra.mxu0 0.0
    %534 = vmatprep.subr.mxu0 0.0
    %535 = vmatpush1.msra.mxu0 0.0
    %536 = vmatprep.subr.mxu0 0.0
    %537 = vmatpush1.msra.mxu0 0.0
    %538 = vmatprep.subr.mxu0 0.0
    %539 = vmatpush1.msra.mxu0 0.0
    %540 = vmatprep.subr.mxu0 0.0
    %541 = vmatpush1.msra.mxu0 0.0
    %542 = vmatprep.subr.mxu0 0.0
    %543 = vmatpush1.msra.mxu0 0.0
    %544 = vmatprep.subr.mxu0 0.0
    %545 = vmatpush1.msra.mxu0 0.0
    %546 = vmatprep.subr.mxu0 0.0
    %547 = vmatpush1.msra.mxu0 0.0
    %548 = vmatprep.subr.mxu0 0.0
    %549 = vmatpush1.msra.mxu0 0.0
    %550 = vmatprep.mubr.f32.mxu0 0.0
    %551 = vmatmul.mubr.f32.gmra.mrb[0].mxu0 %v414
    %v552 = vpop.f32.mrb[0].mxu0
    %v553 = vadd.f32 0.0, %v552
    %v554 = vpop.f32.mrb[0].mxu0
    %555 = vdwg.mxu0
    %v556 = vadd.f32 %v291, %v482
    %v557 = vxor.u32 %v556, 2147483648
    %v558 = vmul.f32 %v557, 1.442695
    %v559 = vpow.pop %v558
    %v560 = vadd.f32 %v559, 1.0
    %v561 = vrcp.pop %v560
    %v562 = vmul.f32 1.0, %v561
    %v563 = vadd.f32 %v293, %v484
    %v564 = vxor.u32 %v563, 2147483648
    %v565 = vmul.f32 %v564, 1.442695
    %v566 = vpow.pop %v565
    %v567 = vadd.f32 %v566, 1.0
    %v568 = vrcp.pop %v567
    %v569 = vmul.f32 1.0, %v568
    %v570 = vadd.f32 %v553, %v413
    %v571 = vmul.f32 %v562, %v570
    %v572 = vadd.f32 %v362, %v571
    %v573 = vtanh.pop %v572
    %v574 = vsub.f32 1.0, %v569
    %v575 = vmul.f32 %v574, %v573
    %v576 = vmul.f32 %v569, %v414
    %v577 = vadd.f32 %v575, %v576
    %578 = vst [vmem:[#allocation9] sm:$0x1] %v577
    // Predicated region
    $region42: #{tpu_custom_call.1} parent=1 // pred_check
      _
    $region43: #{tpu_custom_call.1} parent=1 // pred_check_branch
      %580 = sbr.rel (0) target = $region45
    $region44: #{tpu_custom_call.1} parent=1 // pred_region
      %s582 = ssub.s32 16, 16
      %583 = vsyncadd [#allocation5], %s582
      %s585 = sshll.u32 [#allocation9], 4
      %s586 = int_to_ptr.vmem [resolvable:$true] %s585
      %588 = dma.vmem_to_hbm [thread:$0]  %s586, 16, %s7, [#allocation5]
    $region45: #{tpu_custom_call.1} parent=1 // pred_fallthru
      _
    // Predicated region
    $region46: #{tpu_custom_call.1} parent=1 // pred_check
      _
    $region47: #{tpu_custom_call.1} parent=1 // pred_check_branch
      %590 = sbr.rel (0) target = $region49
    $region48: #{tpu_custom_call.1} parent=1 // pred_region
      %591 = dma.done [#allocation5], 16
    $region49: #{tpu_custom_call.1} parent=1 // pred_fallthru
      _
    %592 = vsyncpa [#allocation4], 1
    %593 = vsyncpa [#allocation7], 1
    %594 = vsyncpa [#allocation5], 1

</llo_original>
